<compile_context>
chip_gen: v5e
topology: v5e:2x2
jax: 0.10.0
libtpu: 0.0.40
codegen_flags: <defaults>
</compile_context>

<pallas_src>
import functools

import jax
import jax.numpy as jnp
from jax.experimental import pallas as pl
from jax.experimental.pallas import tpu as pltpu


def _ensemble_matmul_f32_kernel(x_ref, w_ref, b_ref, o_ref, *, inv_m):
    """f32 output: accumulate directly into the resident output tile (no scratch)."""
    k = pl.program_id(2)

    @pl.when(k == 0)
    def _():
        o_ref[...] = jnp.zeros_like(o_ref)

    o_ref[...] += jnp.dot(x_ref[...], w_ref[...], preferred_element_type=jnp.float32)

    @pl.when(k == pl.num_programs(2) - 1)
    def _():
        o_ref[...] = o_ref[...] * inv_m + b_ref[...]


def _ensemble_matmul_acc_kernel(x_ref, w_ref, b_ref, o_ref, acc_ref, *, inv_m):
    """Low-precision output: f32 VMEM accumulator, cast once in the epilogue."""
    k = pl.program_id(2)

    @pl.when(k == 0)
    def _():
        acc_ref[...] = jnp.zeros_like(acc_ref)

    acc_ref[...] += jnp.dot(x_ref[...], w_ref[...], preferred_element_type=jnp.float32)

    @pl.when(k == pl.num_programs(2) - 1)
    def _():
        o_ref[...] = (acc_ref[...] * inv_m + b_ref[...]).astype(o_ref.dtype)


def _pick_tile(dim, candidates):
    """Largest candidate that evenly divides `dim`; else use the full extent."""
    for c in candidates:
        if c <= dim and dim % c == 0:
            return c
    return dim


def ensemble_forward(x, weights, biases):
    """x: [B, IN], weights: [M, IN, OUT] (pre-transposed vs torch), biases: [M, OUT] -> [B, OUT]."""
    num_modules, in_f, out_f = weights.shape
    batch = x.shape[0]
    k_total = num_modules * in_f

    # Fold the ensemble-member sum into the contraction dimension (exact algebra).
    x_rep = jnp.tile(x, (1, num_modules))                                  # [B, M*IN]
    w_flat = weights.reshape(k_total, out_f)                               # [M*IN, OUT] (view)
    b_mean = jnp.mean(biases.astype(jnp.float32), axis=0, keepdims=True)   # [1, OUT]

    # Tile sizes: lane/sublane aligned, bounded so that double-buffered weight
    # tiles (2 x tk x tn x 4B <= 2 MiB) plus x tile and accumulator fit easily in
    # v7x's 32 MiB scoped VMEM as well as v5e/v6e.
    tb = _pick_tile(batch, (256, 128, 64, 32, 16, 8))
    tn = _pick_tile(out_f, (512, 256, 128))
    tk = _pick_tile(k_total, (512, 256, 128))
    grid = (batch // tb, out_f // tn, k_total // tk)

    inv_m = 1.0 / num_modules
    out_dtype = x.dtype
    if out_dtype == jnp.float32:
        kernel = functools.partial(_ensemble_matmul_f32_kernel, inv_m=inv_m)
        scratch_shapes = []
    else:
        kernel = functools.partial(_ensemble_matmul_acc_kernel, inv_m=inv_m)
        scratch_shapes = [pltpu.VMEM((tb, tn), jnp.float32)]

    return pl.pallas_call(
        kernel,
        out_shape=jax.ShapeDtypeStruct((batch, out_f), out_dtype),
        grid_spec=pltpu.PrefetchScalarGridSpec(
            num_scalar_prefetch=0,
            grid=grid,
            in_specs=[
                pl.BlockSpec((tb, tk), lambda i, j, k: (i, k)),   # x (replicated across members via K)
                pl.BlockSpec((tk, tn), lambda i, j, k: (k, j)),   # stacked member weights
                pl.BlockSpec((1, tn), lambda i, j, k: (0, j)),    # mean bias (added once in epilogue)
            ],
            out_specs=pl.BlockSpec((tb, tn), lambda i, j, k: (i, j)),
            scratch_shapes=scratch_shapes,
        ),
        compiler_params=pltpu.CompilerParams(
            dimension_semantics=("parallel", "parallel", "arbitrary"),
        ),
    )(x_rep, w_flat, b_mean)


if __name__ == "__main__":
    # Small, deterministic setup: 3 Linear members of an EnsembleModel.
    num_modules = 3
    batch = 8
    in_features = 32
    out_features = 128

    key = jax.random.PRNGKey(0)
    kx, kw, kb = jax.random.split(key, 3)

    x = jax.random.normal(kx, (batch, in_features), dtype=jnp.float32)
    # Deterministic synthetic params (shapes follow nn.Linear(in, out), pre-transposed).
    weights = (
        jax.random.normal(kw, (num_modules, in_features, out_features), dtype=jnp.float32)
        * 0.05
    )
    biases = (
        jax.random.normal(kb, (num_modules, out_features), dtype=jnp.float32) * 0.1
    )

    out = jax.block_until_ready(ensemble_forward(x, weights, biases))

    # Pure-JAX reference of the PyTorch forward (per-member sum, then mean).
    ref = x @ weights[0] + biases[0]
    for i in range(1, num_modules):
        ref = ref + (x @ weights[i] + biases[i])
    ref = ref / num_modules

    assert out.shape == (batch, out_features)
    assert jnp.allclose(out, ref, atol=5e-5, rtol=5e-5), "mismatch vs reference"

    print("KERNEL_OK")
</pallas_src>

<mosaic_0001>
module attributes {stable_mosaic.version = 11 : i64} {
  func.func @_ensemble_matmul_f32_kernel(%arg0: i32, %arg1: i32, %arg2: i32, %arg3: memref<8x96xf32, #tpu.memory_space<vmem>>, %arg4: memref<96x128xf32, #tpu.memory_space<vmem>>, %arg5: memref<1x128xf32, #tpu.memory_space<vmem>>, %arg6: memref<8x128xf32, #tpu.memory_space<vmem>>) attributes {dimension_semantics = [#tpu.dimension_semantics<parallel>, #tpu.dimension_semantics<parallel>, #tpu.dimension_semantics<arbitrary>], iteration_bounds = array<i64: 1, 1, 1>, scalar_prefetch = 0 : i64, scratch_operands = 0 : i64, tpu.core_type = #tpu.core_type<tc>, window_params = [{transform_indices = @transform_0, window_bounds = array<i64: 8, 96>}, {transform_indices = @transform_1, window_bounds = array<i64: 96, 128>}, {transform_indices = @transform_2, window_bounds = array<i64: 1, 128>}, {transform_indices = @transform_3, window_bounds = array<i64: 8, 128>}]} {
    %c0_i32 = arith.constant 0 : i32
    %0 = arith.cmpi eq, %arg2, %c0_i32 : i32
    %1 = arith.extui %0 : i1 to i32
    %c0_i32_0 = arith.constant 0 : i32
    %2 = arith.cmpi ne, %1, %c0_i32_0 : i32
    scf.if %2 {
      %cst_10 = arith.constant 0.000000e+00 : f32
      %12 = vector.broadcast %cst_10 : f32 to vector<8x128xf32>
      %c0_11 = arith.constant 0 : index
      %c0_12 = arith.constant 0 : index
      %13 = vector.load %arg6[%c0_11, %c0_12] : memref<8x128xf32, #tpu.memory_space<vmem>>, vector<8x128xf32>
      tpu.vector_store %arg6[%c0_11, %c0_12], %12 {strides = array<i32>} : memref<8x128xf32, #tpu.memory_space<vmem>>, vector<8x128xf32>,
    } else {
    }
    %c0 = arith.constant 0 : index
    %c0_1 = arith.constant 0 : index
    %3 = vector.load %arg6[%c0, %c0_1] : memref<8x128xf32, #tpu.memory_space<vmem>>, vector<8x128xf32>
    %c0_2 = arith.constant 0 : index
    %c0_3 = arith.constant 0 : index
    %4 = vector.load %arg3[%c0_2, %c0_3] : memref<8x96xf32, #tpu.memory_space<vmem>>, vector<8x96xf32>
    %c0_4 = arith.constant 0 : index
    %c0_5 = arith.constant 0 : index
    %5 = vector.load %arg4[%c0_4, %c0_5] : memref<96x128xf32, #tpu.memory_space<vmem>>, vector<96x128xf32>
    %cst = arith.constant dense<0.000000e+00> : vector<8x128xf32>
    %6 = tpu.matmul %4, %5, %cst {dimension_numbers = #tpu.dot_dimension_numbers<[1], [0], [0], [1], [0, 0, 1, 1], [], []>} : vector<8x96xf32>, vector<96x128xf32>, vector<8x128xf32> -> vector<8x128xf32>
    %7 = arith.addf %3, %6 : vector<8x128xf32>
    %c0_6 = arith.constant 0 : index
    %c0_7 = arith.constant 0 : index
    %8 = vector.load %arg6[%c0_6, %c0_7] : memref<8x128xf32, #tpu.memory_space<vmem>>, vector<8x128xf32>
    tpu.vector_store %arg6[%c0_6, %c0_7], %7 {strides = array<i32>} : memref<8x128xf32, #tpu.memory_space<vmem>>, vector<8x128xf32>,
    %c0_i32_8 = arith.constant 0 : i32
    %9 = arith.cmpi eq, %arg2, %c0_i32_8 : i32
    %10 = arith.extui %9 : i1 to i32
    %c0_i32_9 = arith.constant 0 : i32
    %11 = arith.cmpi ne, %10, %c0_i32_9 : i32
    scf.if %11 {
      %c0_10 = arith.constant 0 : index
      %c0_11 = arith.constant 0 : index
      %12 = vector.load %arg6[%c0_10, %c0_11] : memref<8x128xf32, #tpu.memory_space<vmem>>, vector<8x128xf32>
      %cst_12 = arith.constant 0.333333343 : f32
      %13 = vector.broadcast %cst_12 : f32 to vector<8x128xf32>
      %14 = arith.mulf %12, %13 : vector<8x128xf32>
      %c0_13 = arith.constant 0 : index
      %c0_14 = arith.constant 0 : index
      %15 = vector.load %arg5[%c0_13, %c0_14] : memref<1x128xf32, #tpu.memory_space<vmem>>, vector<1x128xf32>
      %16 = vector.broadcast %15 : vector<1x128xf32> to vector<8x128xf32>
      %17 = arith.addf %14, %16 : vector<8x128xf32>
      %c0_15 = arith.constant 0 : index
      %c0_16 = arith.constant 0 : index
      %18 = vector.load %arg6[%c0_15, %c0_16] : memref<8x128xf32, #tpu.memory_space<vmem>>, vector<8x128xf32>
      tpu.vector_store %arg6[%c0_15, %c0_16], %17 {strides = array<i32>} : memref<8x128xf32, #tpu.memory_space<vmem>>, vector<8x128xf32>,
    } else {
    }
    return
  }
  func.func @transform_0(%arg0: i32, %arg1: i32, %arg2: i32) -> (i32, i32) {
    %c0_i32 = arith.constant 0 : i32
    return %arg0, %arg2 : i32, i32
  }
  func.func @transform_1(%arg0: i32, %arg1: i32, %arg2: i32) -> (i32, i32) {
    %c0_i32 = arith.constant 0 : i32
    return %arg2, %arg1 : i32, i32
  }
  func.func @transform_2(%arg0: i32, %arg1: i32, %arg2: i32) -> (i32, i32) {
    %c0_i32 = arith.constant 0 : i32
    %c0_i32_0 = arith.constant 0 : i32
    return %c0_i32, %arg1 : i32, i32
  }
  func.func @transform_3(%arg0: i32, %arg1: i32, %arg2: i32) -> (i32, i32) {
    %c0_i32 = arith.constant 0 : i32
    return %arg0, %arg1 : i32, i32
  }
}

</mosaic_0001>

<llo_original>
// kernel: tpu_custom_call.1
$region0: #{tpu_custom_call.1}
  #allocation0 [shape = 'u32[]', space=smem, size = 0x4, offset = 0x4, fixed_abs, tag = 'smem constant byte address 0x4 - core index']
  #allocation1 [shape = 'u32[72,128]{1,0:T(1,128)}', space=vmem, size = 0x9000, scoped, tag = 'internal scratch']
  %s0 = inlined_call_operand.hbm [shape: f32[8,96], index: 0, kind: input, shape index: {}]
  %s1 = inlined_call_operand.hbm [shape: f32[96,128], index: 1, kind: input, shape index: {}]
  %s2 = inlined_call_operand.vmem [shape: f32[1,128], index: 2, kind: input, shape index: {}]
  %s3 = inlined_call_operand.hbm [shape: f32[8,128], index: 3, kind: output, shape index: {}]
  %s4 = sld [smem:[#allocation0]]
  $region38: #{tpu_custom_call.1} parent=0
    _
  %s6 = ssub.s32 1, %s4
  %s7 = scalar_select 0, %s6, %s4
  $region1: #{tpu_custom_call.1} parent=0
    #allocation2 [shape = 'u8[4096]{0}', space=vmem, size = 0x1000, scoped, tag = 'input window, operand 0, single buffered']
    #allocation3 [shape = 's32[1]{0}', space=sflag, size = 0x4, scoped, tag = 'scoped memory for tpu_custom_call.1']
    #allocation4 [shape = 's32[1]{0}', space=sflag, size = 0x4, scoped, tag = 'scoped memory for tpu_custom_call.1']
    #allocation5 [shape = 'u8[49152]{0}', space=vmem, size = 0xc000, scoped, tag = 'input window, operand 1, single buffered']
    #allocation6 [shape = 's32[1]{0}', space=sflag, size = 0x4, scoped, tag = 'scoped memory for tpu_custom_call.1']
    #allocation7 [shape = 'u8[4096]{0}', space=vmem, size = 0x1000, scoped, tag = 'output window, operand 0, single buffered']
    %8 = vsyncpa [#allocation3], 0
    %9 = vsyncpa [#allocation6], 0
    %10 = vsyncpa [#allocation4], 0
    // Predicated region
    $region2: #{tpu_custom_call.1} parent=1 // pred_check
      _
    $region3: #{tpu_custom_call.1} parent=1 // pred_check_branch
      %12 = sbr.rel (0) target = $region5
    $region4: #{tpu_custom_call.1} parent=1 // pred_region
      %14 = vsyncadd [#allocation3], 0
      %s16 = sshll.u32 %s0, 4
      %s17 = int_to_ptr.hbm [resolvable:$true] %s16
      %s18 = sshll.u32 [#allocation2], 4
      %s19 = int_to_ptr.vmem [resolvable:$true] %s18
      %21 = dma.hbm_to_vmem [thread:$0]  %s17, 128, %s19, [#allocation3]
    $region5: #{tpu_custom_call.1} parent=1 // pred_fallthru
      _
    // Predicated region
    $region6: #{tpu_custom_call.1} parent=1 // pred_check
      _
    $region7: #{tpu_custom_call.1} parent=1 // pred_check_branch
      %23 = sbr.rel (0) target = $region9
    $region8: #{tpu_custom_call.1} parent=1 // pred_region
      %25 = vsyncadd [#allocation6], 0
      %s26 = sshll.u32 %s1, 4
      %s27 = int_to_ptr.hbm [resolvable:$true] %s26
      %s28 = sshll.u32 [#allocation5], 4
      %s29 = int_to_ptr.vmem [resolvable:$true] %s28
      %34 = dma.hbm_to_vmem [thread:$0]  %s27, 1536, %s29, [#allocation6], 128, 128, 8
    $region9: #{tpu_custom_call.1} parent=1 // pred_fallthru
      _
    // Predicated region
    $region10: #{tpu_custom_call.1} parent=1 // pred_check
      _
    $region11: #{tpu_custom_call.1} parent=1 // pred_check_branch
      %36 = sbr.rel (0) target = $region13
    $region12: #{tpu_custom_call.1} parent=1 // pred_region
      _
    $region13: #{tpu_custom_call.1} parent=1 // pred_fallthru
      _
    // Predicated region
    $region14: #{tpu_custom_call.1} parent=1 // pred_check
      _
    $region15: #{tpu_custom_call.1} parent=1 // pred_check_branch
      %38 = sbr.rel (0) target = $region17
    $region16: #{tpu_custom_call.1} parent=1 // pred_region
      %40 = dma.done [#allocation3], 128
    $region17: #{tpu_custom_call.1} parent=1 // pred_fallthru
      _
    // Predicated region
    $region18: #{tpu_custom_call.1} parent=1 // pred_check
      _
    $region19: #{tpu_custom_call.1} parent=1 // pred_check_branch
      %42 = sbr.rel (0) target = $region21
    $region20: #{tpu_custom_call.1} parent=1 // pred_region
      %44 = dma.done [#allocation6], 1536
    $region21: #{tpu_custom_call.1} parent=1 // pred_fallthru
      _
    %p45 = scmp.eq.s32.totalorder 0, 0
    // Predicated region
    $region22: #{tpu_custom_call.1} parent=1 // pred_check
      %p46 = pneg %p45
    $region23: #{tpu_custom_call.1} parent=1 // pred_check_branch
      %48 = sbr.rel (%p46) target = $region25
    $region24: #{tpu_custom_call.1} parent=1 // pred_region
      %49 = vst [vmem:[#allocation7] sm:$0xff] 0.0
    $region25: #{tpu_custom_call.1} parent=1 // pred_fallthru
      _
    %v50 = vld [vmem:[#allocation7] sm:$0xff]
    %v51 = vld [vmem:[#allocation2] sm:$0xff]
    %v52 = vld [vmem:[#allocation5] sm:$0xff]
    %v53 = vld [vmem:[#allocation5 + $0x8] sm:$0xff]
    %v54 = vld [vmem:[#allocation5 + $0x10] sm:$0xff]
    %v55 = vld [vmem:[#allocation5 + $0x18] sm:$0xff]
    %v56 = vld [vmem:[#allocation5 + $0x20] sm:$0xff]
    %v57 = vld [vmem:[#allocation5 + $0x28] sm:$0xff]
    %v58 = vld [vmem:[#allocation5 + $0x30] sm:$0xff]
    %v59 = vld [vmem:[#allocation5 + $0x38] sm:$0xff]
    %v60 = vld [vmem:[#allocation5 + $0x40] sm:$0xff]
    %v61 = vld [vmem:[#allocation5 + $0x48] sm:$0xff]
    %v62 = vld [vmem:[#allocation5 + $0x50] sm:$0xff]
    %v63 = vld [vmem:[#allocation5 + $0x58] sm:$0xff]
    %vm64 = vcmask 785408
    %v66 = vsel %vm64, %v51, 0
    %68 = vmatpush.msra.mxu0 0.0
    %69 = vmatpush.msra.mxu0 0.0
    %70 = vmatpush.msra.mxu0 0.0
    %71 = vmatpush.msra.mxu0 0.0
    %72 = vmatpush.msra.mxu0 %v63
    %73 = vmatpush.msra.mxu0 %v62
    %74 = vmatpush.msra.mxu0 %v61
    %75 = vmatpush.msra.mxu0 %v60
    %76 = vmatpush.msra.mxu0 %v59
    %77 = vmatpush.msra.mxu0 %v58
    %78 = vmatpush.msra.mxu0 %v57
    %79 = vmatpush.msra.mxu0 %v56
    %80 = vmatpush.msra.mxu0 %v55
    %81 = vmatpush.msra.mxu0 %v54
    %82 = vmatpush.msra.mxu0 %v53
    %83 = vmatpush.msra.mxu0 %v52
    %84 = vmatmul.f32.gmra.mxu0 %v66
    %v85 = vpop.f32.mrf.mxu0
    %v86 = vadd.f32 0.0, %v85
    %87 = vdwg.mxu0
    %v88 = vadd.f32 %v50, %v86
    %89 = vst [vmem:[#allocation7] sm:$0xff] %v88
    // Predicated region
    $region26: #{tpu_custom_call.1} parent=1 // pred_check
      %p90 = pneg %p45
    $region27: #{tpu_custom_call.1} parent=1 // pred_check_branch
      %92 = sbr.rel (%p90) target = $region29
    $region28: #{tpu_custom_call.1} parent=1 // pred_region
      %v93 = vld [vmem:[#allocation7] sm:$0xff]
      %v94 = vmul.f32 %v93, 0.33333334
      %v95 = vld [vmem:[%s2] sm:$0x1]
      %v97 = vperm.slane %v95, 0
      %v99 = vadd.f32 %v94, %v97
      %100 = vst [vmem:[#allocation7] sm:$0xff] %v99
    $region29: #{tpu_custom_call.1} parent=1 // pred_fallthru
      _
    // Predicated region
    $region30: #{tpu_custom_call.1} parent=1 // pred_check
      _
    $region31: #{tpu_custom_call.1} parent=1 // pred_check_branch
      %102 = sbr.rel (0) target = $region33
    $region32: #{tpu_custom_call.1} parent=1 // pred_region
      %104 = vsyncadd [#allocation4], 0
      %s106 = sshll.u32 [#allocation7], 4
      %s107 = int_to_ptr.vmem [resolvable:$true] %s106
      %s108 = sshll.u32 %s3, 4
      %s109 = int_to_ptr.hbm [resolvable:$true] %s108
      %111 = dma.vmem_to_hbm [thread:$0]  %s107, 128, %s109, [#allocation4]
    $region33: #{tpu_custom_call.1} parent=1 // pred_fallthru
      _
    // Predicated region
    $region34: #{tpu_custom_call.1} parent=1 // pred_check
      _
    $region35: #{tpu_custom_call.1} parent=1 // pred_check_branch
      %113 = sbr.rel (0) target = $region37
    $region36: #{tpu_custom_call.1} parent=1 // pred_region
      %115 = dma.done [#allocation4], 128
    $region37: #{tpu_custom_call.1} parent=1 // pred_fallthru
      _
    %116 = vsyncpa [#allocation3], 1
    %117 = vsyncpa [#allocation6], 1
    %118 = vsyncpa [#allocation4], 1

</llo_original>
